<compile_context>
chip_gen: v7x
topology: tpu7x:2x2x1
jax: 0.10.0
libtpu: 0.0.40
codegen_flags: <defaults>
</compile_context>

<pallas_src>
import functools

import jax
import jax.numpy as jnp
from jax.experimental import pallas as pl
from jax.experimental.pallas import tpu as pltpu


# ----------------------------- helpers --------------------------------------
def _round_up(x, m):
    return ((x + m - 1) // m) * m


def _pad2(a, rows, cols):
    r, c = a.shape
    return jnp.pad(a, ((0, rows - r), (0, cols - c)))


# ----------------------------- activations ----------------------------------
def _apply_actv(y, actv_type):
    if actv_type == "identity":
        return y
    if actv_type == "tanh":
        return jnp.tanh(y)
    if actv_type == "relu":
        return jnp.maximum(y, 0.0)
    if actv_type == "relu6":
        return jnp.clip(y, 0.0, 6.0)
    if actv_type == "elu":
        return jnp.where(y > 0, y, jnp.expm1(y))
    if actv_type == "gelu":
        # PyTorch nn.GELU() default = exact (erf-based) gelu.
        return 0.5 * y * (1.0 + jax.lax.erf(y / jnp.sqrt(2.0).astype(y.dtype)))
    if actv_type == "leaky_relu":
        return jnp.where(y > 0, y, 0.01 * y)  # PyTorch default negative_slope
    raise ValueError(f"unknown activation {actv_type}")


# ------------------------------- fused kernel --------------------------------
def _mlp_kernel(x_ref, *rest, actv_type, n_layers, matmul_dtype):
    # rest = (w0, b0, w1, b1, ..., o_ref)
    #   x_ref : (TB, IN_p)      input dtype (f32)
    #   w_l   : (D_{l-1}_p, D_l_p)  pre-cast to matmul_dtype in the wrapper
    #   b_l   : (1, D_l_p)      f32
    #   o_ref : (TB, D_last_p)
    o_ref = rest[-1]
    wb = rest[:-1]

    h = x_ref[...].astype(jnp.float32)  # activation stays resident on-chip
    for layer in range(n_layers):
        w_ref = wb[2 * layer]
        b_ref = wb[2 * layer + 1]
        # bf16 (or f32) MXU matmul, f32 accumulation.
        y = jnp.dot(h.astype(matmul_dtype), w_ref[...],
                    preferred_element_type=jnp.float32)
        y = y + b_ref[...]              # bias is already f32 (no per-tile cast)
        h = _apply_actv(y, actv_type)
        # Dropout: eval-mode identity (deterministic forward).
        # TODO(synk): training-mode stochastic dropout via pltpu.prng_seed +
        # pltpu.stateful_bernoulli if needed.

    o_ref[...] = h.astype(o_ref.dtype)


# ----------------------------- MLPBlock wrapper ------------------------------
class MLPBlockPallas:
    """JAX/Pallas equivalent of pecos MLPBlock (eval-mode forward)."""

    def __init__(self, inp_size, dropout_prob, actv_type, hid_size_list, key,
                 matmul_dtype=jnp.bfloat16, batch_tile=256):
        del dropout_prob  # identity in eval-mode forward
        self.actv_type = actv_type
        self.inp_size = inp_size
        self.hid_size_list = list(hid_size_list)
        self.matmul_dtype = matmul_dtype
        self.batch_tile = batch_tile

        # Master f32 params, w_t stored pre-transposed as (in, out)
        # (PyTorch nn.Linear default init: uniform +-1/sqrt(in)).
        self.params_f32 = []
        cur = inp_size
        for hid in hid_size_list:
            key, kw, kb = jax.random.split(key, 3)
            bound = 1.0 / (cur ** 0.5)
            w = jax.random.uniform(kw, (hid, cur), jnp.float32, -bound, bound)
            b = jax.random.uniform(kb, (hid,), jnp.float32, -bound, bound)
            self.params_f32.append((w.T, b))
            cur = hid

        # Lane-dense padded kernel params (zero pad -> exact: act(0) == 0 for
        # every supported activation, and padded weight rows are zero).
        self.inp_size_p = _round_up(inp_size, 128)
        self.hid_p = [_round_up(h, 128) for h in hid_size_list]
        self.kernel_params = []
        prev_p = self.inp_size_p
        for (w_t, b), hp in zip(self.params_f32, self.hid_p):
            w_pad = _pad2(w_t, prev_p, hp).astype(matmul_dtype)     # cast once
            b_pad = jnp.pad(b, (0, hp - b.shape[0])).reshape(1, hp)
            b_pad = b_pad.astype(jnp.float32)
            self.kernel_params.append((w_pad, b_pad))
            prev_p = hp

        # TODO(synk): add a K grid axis with a (TB, TN) f32 accumulator
        # (pl.when init/finalize) if real-world layer widths are too large to
        # hold each (IN_p, OUT_p) weight as a single VMEM block.

    def __call__(self, x):
        B, IN = x.shape
        assert IN == self.inp_size
        IN_p = self.inp_size_p
        OUT = self.hid_size_list[-1]
        OUT_p = self.hid_p[-1]
        n_layers = len(self.kernel_params)

        # Batch tiling: TB multiple of 8 (f32 sublane), pad B so grid divides.
        TB = min(self.batch_tile, _round_up(B, 8))
        B_p = _round_up(B, TB)
        x_p = jnp.pad(x, ((0, B_p - B), (0, IN_p - IN)))

        flat_params = []
        for w, b in self.kernel_params:
            flat_params += [w, b]

        in_specs = [pl.BlockSpec((TB, IN_p), lambda i: (i, 0))]
        for w, b in self.kernel_params:
            in_specs.append(pl.BlockSpec(w.shape, lambda i: (0, 0)))
            in_specs.append(pl.BlockSpec(b.shape, lambda i: (0, 0)))
        out_spec = pl.BlockSpec((TB, OUT_p), lambda i: (i, 0))

        # Explicit VMEM budget (double-buffered blocks + headroom), clamped to
        # 64 MiB so the same tiling is safe on v7x.
        blk_bytes = (TB * IN_p * x_p.dtype.itemsize
                     + TB * OUT_p * x.dtype.itemsize)
        for w, b in self.kernel_params:
            blk_bytes += w.size * w.dtype.itemsize + b.size * b.dtype.itemsize
        vmem_limit = int(min(64 * 1024 * 1024,
                             max(8 * 1024 * 1024, 2 * blk_bytes + (4 << 20))))

        kernel = functools.partial(
            _mlp_kernel,
            actv_type=self.actv_type,
            n_layers=n_layers,
            matmul_dtype=self.matmul_dtype,
        )

        out_p = pl.pallas_call(
            kernel,
            out_shape=jax.ShapeDtypeStruct((B_p, OUT_p), x.dtype),
            grid_spec=pltpu.PrefetchScalarGridSpec(
                num_scalar_prefetch=0,
                grid=(B_p // TB,),
                in_specs=in_specs,
                out_specs=out_spec,
            ),
            compiler_params=pltpu.CompilerParams(
                dimension_semantics=("parallel",),   # v7x: shard batch over TCs
                vmem_limit_bytes=vmem_limit,
            ),
        )(x_p, *flat_params)

        return out_p[:B, :OUT]


# --------------------------------- main ---------------------------------------
if __name__ == "__main__":
    key = jax.random.PRNGKey(0)
    key, kx, kp = jax.random.split(key, 3)

    batch = 512           # > batch_tile so the grid really has >1 step
    inp_size = 32
    hid_size_list = [64, 32]
    actv_type = "gelu"
    dropout_prob = 0.1    # identity in eval-mode forward

    x = jax.random.normal(kx, (batch, inp_size), jnp.float32)

    model = MLPBlockPallas(inp_size, dropout_prob, actv_type, hid_size_list, kp,
                           matmul_dtype=jnp.bfloat16, batch_tile=256)
    out = jax.block_until_ready(model(x))
    assert out.shape == (batch, hid_size_list[-1])

    # Reference 1: plain JAX replicating the kernel's bf16-matmul / f32-accum
    # numerics (tight check).
    ref_bf16 = x
    for w_t, b in model.params_f32:
        y = jnp.dot(ref_bf16.astype(jnp.bfloat16), w_t.astype(jnp.bfloat16),
                    preferred_element_type=jnp.float32) + b
        ref_bf16 = _apply_actv(y, actv_type)
    assert jnp.allclose(out, ref_bf16, atol=1e-3, rtol=1e-3), (
        float(jnp.max(jnp.abs(out - ref_bf16))))

    # Reference 2: full-f32 math (PyTorch-equivalent semantics), loose check
    # since the kernel uses bf16 MXU inputs.
    ref_f32 = x
    for w_t, b in model.params_f32:
        ref_f32 = _apply_actv(ref_f32 @ w_t + b, actv_type)
    assert jnp.allclose(out, ref_f32, atol=1e-1, rtol=1e-1), (
        float(jnp.max(jnp.abs(out - ref_f32))))

    print("KERNEL_OK")
</pallas_src>

<mosaic_0001>
module attributes {stable_mosaic.version = 11 : i64} {
  func.func @_mlp_kernel(%arg0: i32, %arg1: memref<256x128xf32, #tpu.memory_space<vmem>>, %arg2: memref<128x128xbf16, #tpu.memory_space<vmem>>, %arg3: memref<1x128xf32, #tpu.memory_space<vmem>>, %arg4: memref<128x128xbf16, #tpu.memory_space<vmem>>, %arg5: memref<1x128xf32, #tpu.memory_space<vmem>>, %arg6: memref<256x128xf32, #tpu.memory_space<vmem>>) attributes {dimension_semantics = [#tpu.dimension_semantics<parallel>], iteration_bounds = array<i64: 2>, scalar_prefetch = 0 : i64, scratch_operands = 0 : i64, tpu.core_type = #tpu.core_type<tc>, window_params = [{transform_indices = @transform_0, window_bounds = array<i64: 256, 128>}, {pipeline_mode = #tpu.pipeline_mode<synchronous>, transform_indices = @transform_1, window_bounds = array<i64: 128, 128>}, {pipeline_mode = #tpu.pipeline_mode<synchronous>, transform_indices = @transform_2, window_bounds = array<i64: 1, 128>}, {pipeline_mode = #tpu.pipeline_mode<synchronous>, transform_indices = @transform_3, window_bounds = array<i64: 128, 128>}, {pipeline_mode = #tpu.pipeline_mode<synchronous>, transform_indices = @transform_4, window_bounds = array<i64: 1, 128>}, {transform_indices = @transform_5, window_bounds = array<i64: 256, 128>}]} {
    %c0 = arith.constant 0 : index
    %c0_0 = arith.constant 0 : index
    %0 = vector.load %arg1[%c0, %c0_0] : memref<256x128xf32, #tpu.memory_space<vmem>>, vector<256x128xf32>
    %1 = arith.truncf %0 : vector<256x128xf32> to vector<256x128xbf16>
    %c0_1 = arith.constant 0 : index
    %c0_2 = arith.constant 0 : index
    %2 = vector.load %arg2[%c0_1, %c0_2] : memref<128x128xbf16, #tpu.memory_space<vmem>>, vector<128x128xbf16>
    %cst = arith.constant dense<0.000000e+00> : vector<256x128xf32>
    %3 = tpu.matmul %1, %2, %cst {dimension_numbers = #tpu.dot_dimension_numbers<[1], [0], [0], [1], [0, 0, 1, 1], [], []>} : vector<256x128xbf16>, vector<128x128xbf16>, vector<256x128xf32> -> vector<256x128xf32>
    %c0_3 = arith.constant 0 : index
    %c0_4 = arith.constant 0 : index
    %4 = vector.load %arg3[%c0_3, %c0_4] : memref<1x128xf32, #tpu.memory_space<vmem>>, vector<1x128xf32>
    %5 = vector.broadcast %4 : vector<1x128xf32> to vector<256x128xf32>
    %6 = arith.addf %3, %5 : vector<256x128xf32>
    %cst_5 = arith.constant 5.000000e-01 : f32
    %7 = vector.broadcast %cst_5 : f32 to vector<256x128xf32>
    %8 = arith.mulf %7, %6 : vector<256x128xf32>
    %cst_6 = arith.constant 2.000000e+00 : f32
    %9 = math.sqrt %cst_6 : f32
    %10 = vector.broadcast %9 : f32 to vector<256x128xf32>
    %11 = arith.divf %6, %10 : vector<256x128xf32>
    %12 = math.erf %11 : vector<256x128xf32>
    %cst_7 = arith.constant 1.000000e+00 : f32
    %13 = vector.broadcast %cst_7 : f32 to vector<256x128xf32>
    %14 = arith.addf %13, %12 : vector<256x128xf32>
    %15 = arith.mulf %8, %14 : vector<256x128xf32>
    %16 = arith.truncf %15 : vector<256x128xf32> to vector<256x128xbf16>
    %c0_8 = arith.constant 0 : index
    %c0_9 = arith.constant 0 : index
    %17 = vector.load %arg4[%c0_8, %c0_9] : memref<128x128xbf16, #tpu.memory_space<vmem>>, vector<128x128xbf16>
    %cst_10 = arith.constant dense<0.000000e+00> : vector<256x128xf32>
    %18 = tpu.matmul %16, %17, %cst_10 {dimension_numbers = #tpu.dot_dimension_numbers<[1], [0], [0], [1], [0, 0, 1, 1], [], []>} : vector<256x128xbf16>, vector<128x128xbf16>, vector<256x128xf32> -> vector<256x128xf32>
    %c0_11 = arith.constant 0 : index
    %c0_12 = arith.constant 0 : index
    %19 = vector.load %arg5[%c0_11, %c0_12] : memref<1x128xf32, #tpu.memory_space<vmem>>, vector<1x128xf32>
    %20 = vector.broadcast %19 : vector<1x128xf32> to vector<256x128xf32>
    %21 = arith.addf %18, %20 : vector<256x128xf32>
    %cst_13 = arith.constant 5.000000e-01 : f32
    %22 = vector.broadcast %cst_13 : f32 to vector<256x128xf32>
    %23 = arith.mulf %22, %21 : vector<256x128xf32>
    %cst_14 = arith.constant 2.000000e+00 : f32
    %24 = math.sqrt %cst_14 : f32
    %25 = vector.broadcast %24 : f32 to vector<256x128xf32>
    %26 = arith.divf %21, %25 : vector<256x128xf32>
    %27 = math.erf %26 : vector<256x128xf32>
    %cst_15 = arith.constant 1.000000e+00 : f32
    %28 = vector.broadcast %cst_15 : f32 to vector<256x128xf32>
    %29 = arith.addf %28, %27 : vector<256x128xf32>
    %30 = arith.mulf %23, %29 : vector<256x128xf32>
    %c0_16 = arith.constant 0 : index
    %c0_17 = arith.constant 0 : index
    %31 = vector.load %arg6[%c0_16, %c0_17] : memref<256x128xf32, #tpu.memory_space<vmem>>, vector<256x128xf32>
    tpu.vector_store %arg6[%c0_16, %c0_17], %30 {strides = array<i32>} : memref<256x128xf32, #tpu.memory_space<vmem>>, vector<256x128xf32>,
    return
  }
  func.func @transform_0(%arg0: i32) -> (i32, i32) {
    %c0_i32 = arith.constant 0 : i32
    %c0_i32_0 = arith.constant 0 : i32
    return %arg0, %c0_i32 : i32, i32
  }
  func.func @transform_1(%arg0: i32) -> (i32, i32) {
    %c0_i32 = arith.constant 0 : i32
    %c0_i32_0 = arith.constant 0 : i32
    %c0_i32_1 = arith.constant 0 : i32
    return %c0_i32, %c0_i32_0 : i32, i32
  }
  func.func @transform_2(%arg0: i32) -> (i32, i32) {
    %c0_i32 = arith.constant 0 : i32
    %c0_i32_0 = arith.constant 0 : i32
    %c0_i32_1 = arith.constant 0 : i32
    return %c0_i32, %c0_i32_0 : i32, i32
  }
  func.func @transform_3(%arg0: i32) -> (i32, i32) {
    %c0_i32 = arith.constant 0 : i32
    %c0_i32_0 = arith.constant 0 : i32
    %c0_i32_1 = arith.constant 0 : i32
    return %c0_i32, %c0_i32_0 : i32, i32
  }
  func.func @transform_4(%arg0: i32) -> (i32, i32) {
    %c0_i32 = arith.constant 0 : i32
    %c0_i32_0 = arith.constant 0 : i32
    %c0_i32_1 = arith.constant 0 : i32
    return %c0_i32, %c0_i32_0 : i32, i32
  }
  func.func @transform_5(%arg0: i32) -> (i32, i32) {
    %c0_i32 = arith.constant 0 : i32
    %c0_i32_0 = arith.constant 0 : i32
    return %arg0, %c0_i32 : i32, i32
  }
}

</mosaic_0001>

<llo_original>
// kernel: tpu_custom_call.1
$region0: #{tpu_custom_call.1}
  #allocation0 [shape = 'u32[]', space=smem, size = 0x4, offset = 0x4, fixed_abs, tag = 'smem constant byte address 0x4 - core index']
  #allocation1 [shape = 'u32[144,128]{1,0:T(1,128)}', space=vmem, size = 0x12000, scoped, tag = 'internal scratch']
  %s0 = inlined_call_operand.hbm [shape: f32[512,128], index: 0, kind: input, shape index: {}]
  %s1 = inlined_call_operand.hbm [shape: bf16[128,128], index: 1, kind: input, shape index: {}]
  %s2 = inlined_call_operand.vmem [shape: f32[1,128], index: 2, kind: input, shape index: {}]
  %s3 = inlined_call_operand.hbm [shape: bf16[128,128], index: 3, kind: input, shape index: {}]
  %s4 = inlined_call_operand.vmem [shape: f32[1,128], index: 4, kind: input, shape index: {}]
  %s5 = inlined_call_operand.hbm [shape: f32[512,128], index: 5, kind: output, shape index: {}]
  %s6 = sld [smem:[#allocation0]]
  $region65: #{tpu_custom_call.1} parent=0
    _
  %s8 = ssub.s32 1, %s6
  %s9 = scalar_select 0, %s8, %s6
  $region1: #{tpu_custom_call.1} parent=0
    #allocation2 [shape = 'u8[262144]{0}', space=vmem, size = 0x40000, scoped, tag = 'input window, operand 0']
    #allocation3 [shape = 's32[2]{0}', space=sflag, size = 0x8, scoped, tag = 'scoped memory for tpu_custom_call.1']
    #allocation4 [shape = 's32[2]{0}', space=sflag, size = 0x8, scoped, tag = 'scoped memory for tpu_custom_call.1']
    #allocation5 [shape = 'u8[32768]{0}', space=vmem, size = 0x8000, scoped, tag = 'input window, operand 1, single buffered']
    #allocation6 [shape = 's32[1]{0}', space=sflag, size = 0x4, scoped, tag = 'scoped memory for tpu_custom_call.1']
    #allocation7 [shape = 'u8[32768]{0}', space=vmem, size = 0x8000, scoped, tag = 'input window, operand 3, single buffered']
    #allocation8 [shape = 'u8[262144]{0}', space=vmem, size = 0x40000, scoped, tag = 'output window, operand 0']
    %10 = vsyncpa [#allocation3], 0
    %s11 = scalar_lea.sflag [#allocation3], 1
    %12 = vsyncpa %s11, 0
    %13 = vsyncpa [#allocation6], 0
    %14 = vsyncpa [#allocation4], 0
    %s15 = scalar_lea.sflag [#allocation4], 1
    %16 = vsyncpa %s15, 0
    loop: start=0, step=1, limit=4
    $region2: #{tpu_custom_call.1} parent=1 // loop_pre_header
      _
    $region3: #{tpu_custom_call.1} parent=1 // loop_header
      %s18 = sphi 0, %s22
      %p19 = scmp.ge.s32.totalorder %s18, 4
      %s28 = sphi 0, %s30
      %s31 = sphi 0, %s28
      %s32 = sphi 0, %s31
      %s48 = sphi 0, %s32
      %s52 = sphi 0, %s52
      %s54 = sphi 0, %s52
      %s55 = sphi 0, %s54
      %s69 = sphi 0, %s55
      %s73 = sphi 0, %s73
      %s75 = sphi 0, %s73
      %s76 = sphi 0, %s75
      %s90 = sphi 0, %s76
      %s94 = sphi 0, %s94
      %s96 = sphi 0, %s94
      %s97 = sphi 0, %s96
      %s111 = sphi 0, %s97
      %s115 = sphi 0, %s115
      %s117 = sphi 0, %s115
      %s118 = sphi 0, %s117
      %s132 = sphi 0, %s118
      %s138 = sphi 0, %s140
      %s141 = sphi 0, %s138
      %s142 = sphi 0, %s141
      %s158 = sphi 0, %s142
    $region4: #{tpu_custom_call.1} parent=1 // loop_header_branch
      %21 = sbr.rel (%p19) target = $region8
    $region5: #{tpu_custom_call.1} parent=1 // loop_body
      %s23 = ssub.s32 %s18, 1
      %s24 = ssub.s32 %s18, 2
      %s25 = sadd.s32 %s18, 1
      %s26 = ssub.s32 %s18, %s25
      %p27 = scmp.eq.s32.totalorder %s26, 0
      %s29 = sadd.s32 %s28, 1
      %s30 = scalar_select %p27, %s28, %s29
      %p33 = pneg %p27
      %p34 = scmp.eq.s32.totalorder %s18, 1
      %p35 = por %p33, %p34
      %p36 = scmp.ne.s32.totalorder %s28, %s31
      %p37 = scmp.eq.s32.totalorder %s18, 0
      %p38 = por %p36, %p37
      %p39 = scmp.ne.s32.totalorder %s28, %s31
      %p40 = scmp.eq.s32.totalorder %s23, 1
      %p41 = por %p39, %p40
      %p42 = scmp.ne.s32.totalorder %s31, %s32
      %p43 = scmp.eq.s32.totalorder %s23, 0
      %p44 = por %p42, %p43
      %p45 = scmp.ne.s32.totalorder %s31, %s32
      %p46 = scmp.eq.s32.totalorder %s24, 1
      %p47 = por %p45, %p46
      %p49 = scmp.ne.s32.totalorder %s32, %s48
      %p50 = scmp.eq.s32.totalorder %s24, 0
      %p51 = por %p49, %p50
      %s53 = sadd.s32 %s52, 1
      %p56 = scmp.eq.s32.totalorder %s18, 1
      %p57 = scmp.ne.s32.totalorder %s52, %s54
      %p58 = scmp.eq.s32.totalorder %s18, 0
      %p59 = por %p57, %p58
      %p60 = scmp.ne.s32.totalorder %s52, %s54
      %p61 = scmp.eq.s32.totalorder %s23, 1
      %p62 = por %p60, %p61
      %p63 = scmp.ne.s32.totalorder %s54, %s55
      %p64 = scmp.eq.s32.totalorder %s23, 0
      %p65 = por %p63, %p64
      %p66 = scmp.ne.s32.totalorder %s54, %s55
      %p67 = scmp.eq.s32.totalorder %s24, 1
      %p68 = por %p66, %p67
      %p70 = scmp.ne.s32.totalorder %s55, %s69
      %p71 = scmp.eq.s32.totalorder %s24, 0
      %p72 = por %p70, %p71
      %s74 = sadd.s32 %s73, 1
      %p77 = scmp.eq.s32.totalorder %s18, 1
      %p78 = scmp.ne.s32.totalorder %s73, %s75
      %p79 = scmp.eq.s32.totalorder %s18, 0
      %p80 = por %p78, %p79
      %p81 = scmp.ne.s32.totalorder %s73, %s75
      %p82 = scmp.eq.s32.totalorder %s23, 1
      %p83 = por %p81, %p82
      %p84 = scmp.ne.s32.totalorder %s75, %s76
      %p85 = scmp.eq.s32.totalorder %s23, 0
      %p86 = por %p84, %p85
      %p87 = scmp.ne.s32.totalorder %s75, %s76
      %p88 = scmp.eq.s32.totalorder %s24, 1
      %p89 = por %p87, %p88
      %p91 = scmp.ne.s32.totalorder %s76, %s90
      %p92 = scmp.eq.s32.totalorder %s24, 0
      %p93 = por %p91, %p92
      %s95 = sadd.s32 %s94, 1
      %p98 = scmp.eq.s32.totalorder %s18, 1
      %p99 = scmp.ne.s32.totalorder %s94, %s96
      %p100 = scmp.eq.s32.totalorder %s18, 0
      %p101 = por %p99, %p100
      %p102 = scmp.ne.s32.totalorder %s94, %s96
      %p103 = scmp.eq.s32.totalorder %s23, 1
      %p104 = por %p102, %p103
      %p105 = scmp.ne.s32.totalorder %s96, %s97
      %p106 = scmp.eq.s32.totalorder %s23, 0
      %p107 = por %p105, %p106
      %p108 = scmp.ne.s32.totalorder %s96, %s97
      %p109 = scmp.eq.s32.totalorder %s24, 1
      %p110 = por %p108, %p109
      %p112 = scmp.ne.s32.totalorder %s97, %s111
      %p113 = scmp.eq.s32.totalorder %s24, 0
      %p114 = por %p112, %p113
      %s116 = sadd.s32 %s115, 1
      %p119 = scmp.eq.s32.totalorder %s18, 1
      %p120 = scmp.ne.s32.totalorder %s115, %s117
      %p121 = scmp.eq.s32.totalorder %s18, 0
      %p122 = por %p120, %p121
      %p123 = scmp.ne.s32.totalorder %s115, %s117
      %p124 = scmp.eq.s32.totalorder %s23, 1
      %p125 = por %p123, %p124
      %p126 = scmp.ne.s32.totalorder %s117, %s118
      %p127 = scmp.eq.s32.totalorder %s23, 0
      %p128 = por %p126, %p127
      %p129 = scmp.ne.s32.totalorder %s117, %s118
      %p130 = scmp.eq.s32.totalorder %s24, 1
      %p131 = por %p129, %p130
      %p133 = scmp.ne.s32.totalorder %s118, %s132
      %p134 = scmp.eq.s32.totalorder %s24, 0
      %p135 = por %p133, %p134
      %s136 = ssub.s32 %s18, %s25
      %p137 = scmp.eq.s32.totalorder %s136, 0
      %s139 = sadd.s32 %s138, 1
      %s140 = scalar_select %p137, %s138, %s139
      %p143 = pneg %p137
      %p144 = scmp.eq.s32.totalorder %s18, 1
      %p145 = por %p143, %p144
      %p146 = scmp.ne.s32.totalorder %s138, %s141
      %p147 = scmp.eq.s32.totalorder %s18, 0
      %p148 = por %p146, %p147
      %p149 = scmp.ne.s32.totalorder %s138, %s141
      %p150 = scmp.eq.s32.totalorder %s23, 1
      %p151 = por %p149, %p150
      %p152 = scmp.ne.s32.totalorder %s141, %s142
      %p153 = scmp.eq.s32.totalorder %s23, 0
      %p154 = por %p152, %p153
      %p155 = scmp.ne.s32.totalorder %s141, %s142
      %p156 = scmp.eq.s32.totalorder %s24, 1
      %p157 = por %p155, %p156
      %p159 = scmp.ne.s32.totalorder %s142, %s158
      %p160 = scmp.eq.s32.totalorder %s24, 0
      %p161 = por %p159, %p160
      %p162 = scmp.le.s32.totalorder 1, %s18
      %p163 = scmp.lt.s32.totalorder %s18, 3
      %p164 = pnand %p162, %p163
      %p165 = pneg %p164
      // Predicated region
      $region9: #{tpu_custom_call.1} parent=5 // pred_check
        _
      $region10: #{tpu_custom_call.1} parent=5 // pred_check_branch
        %167 = sbr.rel (%p164) target = $region12
      $region11: #{tpu_custom_call.1} parent=5 // pred_region
        %s168 = ssub.s32 %s18, 1
        // Predicated region
        $region13: #{tpu_custom_call.1} parent=11 // pred_check
          %p169 = pneg %p65
        $region14: #{tpu_custom_call.1} parent=11 // pred_check_branch
          %171 = sbr.rel (%p169) target = $region16
        $region15: #{tpu_custom_call.1} parent=11 // pred_region
          %s173 = ssub.s32 1024, 1024
          %174 = vsyncadd [#allocation6], %s173
          %s175 = sshll.u32 [#allocation5], 4
          %s176 = int_to_ptr.vmem [resolvable:$true] %s175
          %181 = dma.hbm_to_vmem [thread:$0]  %s1, 1024, %s176, [#allocation6], 64, 64, 4
        $region16: #{tpu_custom_call.1} parent=11 // pred_fallthru
          _
        // Predicated region
        $region17: #{tpu_custom_call.1} parent=11 // pred_check
          %p182 = pneg %p86
        $region18: #{tpu_custom_call.1} parent=11 // pred_check_branch
          %184 = sbr.rel (%p182) target = $region20
        $region19: #{tpu_custom_call.1} parent=11 // pred_region
          _
        $region20: #{tpu_custom_call.1} parent=11 // pred_fallthru
          _
        // Predicated region
        $region21: #{tpu_custom_call.1} parent=11 // pred_check
          %p185 = pneg %p107
        $region22: #{tpu_custom_call.1} parent=11 // pred_check_branch
          %187 = sbr.rel (%p185) target = $region24
        $region23: #{tpu_custom_call.1} parent=11 // pred_region
          %s189 = ssub.s32 1024, 1024
          %190 = vsyncadd [#allocation6], %s189
          %s191 = sshll.u32 [#allocation7], 4
          %s192 = int_to_ptr.vmem [resolvable:$true] %s191
          %197 = dma.hbm_to_vmem [thread:$0]  %s3, 1024, %s192, [#allocation6], 64, 64, 4
        $region24: #{tpu_custom_call.1} parent=11 // pred_fallthru
          _
        // Predicated region
        $region25: #{tpu_custom_call.1} parent=11 // pred_check
          %p198 = pneg %p128
        $region26: #{tpu_custom_call.1} parent=11 // pred_check_branch
          %200 = sbr.rel (%p198) target = $region28
        $region27: #{tpu_custom_call.1} parent=11 // pred_region
          _
        $region28: #{tpu_custom_call.1} parent=11 // pred_fallthru
          _
      $region12: #{tpu_custom_call.1} parent=5 // pred_fallthru
        _
      %p201 = scmp.lt.s32.totalorder %s18, 2
      // Predicated region
      $region29: #{tpu_custom_call.1} parent=5 // pred_check
        %p202 = pneg %p201
      $region30: #{tpu_custom_call.1} parent=5 // pred_check_branch
        %204 = sbr.rel (%p202) target = $region32
      $region31: #{tpu_custom_call.1} parent=5 // pred_region
        // Predicated region
        $region33: #{tpu_custom_call.1} parent=31 // pred_check
          %p205 = pneg %p38
        $region34: #{tpu_custom_call.1} parent=31 // pred_check_branch
          %207 = sbr.rel (%p205) target = $region36
        $region35: #{tpu_custom_call.1} parent=31 // pred_region
          %s208 = sand.u32 %s28, 1
          %s209 = scalar_lea.sflag [#allocation3], %s208
          %s210 = sand.u32 %s28, 1
          %s211 = smul.addr %s210, 256
          %s212 = scalar_lea.vmem [#allocation2], %s211
          %s213 = smul.u32 32, %s18
          %s215 = ssub.s32 4096, 4096
          %216 = vsyncadd %s209, %s215
          %s217 = smul.addr %s213, 128
          %s218 = scalar_lea.hbm %s0, %s217
          %s219 = sshll.u32 %s212, 4
          %s220 = int_to_ptr.vmem [resolvable:$true] %s219
          %225 = dma.hbm_to_vmem [thread:$0]  %s218, 4096, %s220, %s209, 128, 128, 8
        $region36: #{tpu_custom_call.1} parent=31 // pred_fallthru
          _
      $region32: #{tpu_custom_call.1} parent=5 // pred_fallthru
        _
      %p226 = scmp.le.s32.totalorder 1, %s18
      %p227 = scmp.lt.s32.totalorder %s18, 3
      %p228 = pnand %p226, %p227
      %p229 = pneg %p228
      // Predicated region
      $region37: #{tpu_custom_call.1} parent=5 // pred_check
        _
      $region38: #{tpu_custom_call.1} parent=5 // pred_check_branch
        %231 = sbr.rel (%p228) target = $region40
      $region39: #{tpu_custom_call.1} parent=5 // pred_region
        %s232 = ssub.s32 %s18, 1
        %s233 = sand.u32 %s31, 1
        %s234 = scalar_lea.sflag [#allocation3], %s233
        %s235 = sand.u32 %s31, 1
        %s236 = smul.addr %s235, 256
        %s237 = scalar_lea.vmem [#allocation2], %s236
        // Predicated region
        $region41: #{tpu_custom_call.1} parent=39 // pred_check
          %p238 = pneg %p44
        $region42: #{tpu_custom_call.1} parent=39 // pred_check_branch
          %240 = sbr.rel (%p238) target = $region44
        $region43: #{tpu_custom_call.1} parent=39 // pred_region
          %241 = dma.done %s234, 4096
        $region44: #{tpu_custom_call.1} parent=39 // pred_fallthru
          _
        // Predicated region
        $region45: #{tpu_custom_call.1} parent=39 // pred_check
          %p242 = pneg %p65
        $region46: #{tpu_custom_call.1} parent=39 // pred_check_branch
          %244 = sbr.rel (%p242) target = $region48
        $region47: #{tpu_custom_call.1} parent=39 // pred_region
          %245 = dma.done [#allocation6], 1024
        $region48: #{tpu_custom_call.1} parent=39 // pred_fallthru
          _
        // Predicated region
        $region49: #{tpu_custom_call.1} parent=39 // pred_check
          %p246 = pneg %p107
        $region50: #{tpu_custom_call.1} parent=39 // pred_check_branch
          %248 = sbr.rel (%p246) target = $region52
        $region51: #{tpu_custom_call.1} parent=39 // pred_region
          %249 = dma.done [#allocation6], 1024
        $region52: #{tpu_custom_call.1} parent=39 // pred_fallthru
          _
        %s250 = sand.u32 %s31, 1
        %s251 = scalar_lea.sflag [#allocation3], %s250
        %s252 = sand.u32 %s31, 1
        %s253 = smul.addr %s252, 256
        %s254 = scalar_lea.vmem [#allocation2], %s253
        %p255 = pneg %p44
        %p256 = pneg %p41
        %p257 = pneg %p65
        %p258 = pneg %p62
        %p259 = pneg %p86
        %p260 = pneg %p83
        %p261 = pneg %p107
        %p262 = pneg %p104
        %p263 = pneg %p128
        %p264 = pneg %p125
        %p265 = pneg %p154
        %p266 = pneg %p151
        %s267 = sand.u32 %s141, 1
        %s268 = scalar_lea.sflag [#allocation4], %s267
        %s269 = sand.u32 %s141, 1
        %s270 = smul.addr %s269, 256
        %s271 = scalar_lea.vmem [#allocation8], %s270
        %s272 = smul.u32 32, %s23
        %s273 = smul.u32 32, %s23
        %v275 = vld [vmem:[%s237] sm:$0xff]
        %v276 = vld [vmem:[%s237 + $0x8] sm:$0xff]
        %v277 = vld [vmem:[%s237 + $0x10] sm:$0xff]
        %v278 = vld [vmem:[%s237 + $0x18] sm:$0xff]
        %v279 = vld [vmem:[%s237 + $0x20] sm:$0xff]
        %v280 = vld [vmem:[%s237 + $0x28] sm:$0xff]
        %v281 = vld [vmem:[%s237 + $0x30] sm:$0xff]
        %v282 = vld [vmem:[%s237 + $0x38] sm:$0xff]
        %v283 = vld [vmem:[%s237 + $0x40] sm:$0xff]
        %v284 = vld [vmem:[%s237 + $0x48] sm:$0xff]
        %v285 = vld [vmem:[%s237 + $0x50] sm:$0xff]
        %v286 = vld [vmem:[%s237 + $0x58] sm:$0xff]
        %v287 = vld [vmem:[%s237 + $0x60] sm:$0xff]
        %v288 = vld [vmem:[%s237 + $0x68] sm:$0xff]
        %v289 = vld [vmem:[%s237 + $0x70] sm:$0xff]
        %v290 = vld [vmem:[%s237 + $0x78] sm:$0xff]
        %v291 = vld [vmem:[%s237 + $0x80] sm:$0xff]
        %v292 = vld [vmem:[%s237 + $0x88] sm:$0xff]
        %v293 = vld [vmem:[%s237 + $0x90] sm:$0xff]
        %v294 = vld [vmem:[%s237 + $0x98] sm:$0xff]
        %v295 = vld [vmem:[%s237 + $0xa0] sm:$0xff]
        %v296 = vld [vmem:[%s237 + $0xa8] sm:$0xff]
        %v297 = vld [vmem:[%s237 + $0xb0] sm:$0xff]
        %v298 = vld [vmem:[%s237 + $0xb8] sm:$0xff]
        %v299 = vld [vmem:[%s237 + $0xc0] sm:$0xff]
        %v300 = vld [vmem:[%s237 + $0xc8] sm:$0xff]
        %v301 = vld [vmem:[%s237 + $0xd0] sm:$0xff]
        %v302 = vld [vmem:[%s237 + $0xd8] sm:$0xff]
        %v303 = vld [vmem:[%s237 + $0xe0] sm:$0xff]
        %v304 = vld [vmem:[%s237 + $0xe8] sm:$0xff]
        %v305 = vld [vmem:[%s237 + $0xf0] sm:$0xff]
        %v306 = vld [vmem:[%s237 + $0xf8] sm:$0xff]
        %v307 = vpack.c.bf16 %v276, %v275
        %v308 = vpack.c.bf16 %v278, %v277
        %v309 = vpack.c.bf16 %v280, %v279
        %v310 = vpack.c.bf16 %v282, %v281
        %v311 = vpack.c.bf16 %v284, %v283
        %v312 = vpack.c.bf16 %v286, %v285
        %v313 = vpack.c.bf16 %v288, %v287
        %v314 = vpack.c.bf16 %v290, %v289
        %v315 = vpack.c.bf16 %v292, %v291
        %v316 = vpack.c.bf16 %v294, %v293
        %v317 = vpack.c.bf16 %v296, %v295
        %v318 = vpack.c.bf16 %v298, %v297
        %v319 = vpack.c.bf16 %v300, %v299
        %v320 = vpack.c.bf16 %v302, %v301
        %v321 = vpack.c.bf16 %v304, %v303
        %v322 = vpack.c.bf16 %v306, %v305
        %v323 = vld [vmem:[#allocation5] sm:$0xf]
        %v324 = vld [vmem:[#allocation5 + $0x4] sm:$0xf]
        %v325 = vld [vmem:[#allocation5 + $0x8] sm:$0xf]
        %v326 = vld [vmem:[#allocation5 + $0xc] sm:$0xf]
        %v327 = vld [vmem:[#allocation5 + $0x10] sm:$0xf]
        %v328 = vld [vmem:[#allocation5 + $0x14] sm:$0xf]
        %v329 = vld [vmem:[#allocation5 + $0x18] sm:$0xf]
        %v330 = vld [vmem:[#allocation5 + $0x1c] sm:$0xf]
        %v331 = vld [vmem:[#allocation5 + $0x20] sm:$0xf]
        %v332 = vld [vmem:[#allocation5 + $0x24] sm:$0xf]
        %v333 = vld [vmem:[#allocation5 + $0x28] sm:$0xf]
        %v334 = vld [vmem:[#allocation5 + $0x2c] sm:$0xf]
        %v335 = vld [vmem:[#allocation5 + $0x30] sm:$0xf]
        %v336 = vld [vmem:[#allocation5 + $0x34] sm:$0xf]
        %v337 = vld [vmem:[#allocation5 + $0x38] sm:$0xf]
        %v338 = vld [vmem:[#allocation5 + $0x3c] sm:$0xf]
        %v339 = vld [vmem:[%s2] sm:$0x1]
        %v341 = vlaneseq
        %v342 = vshrl.u32 %v341, 7
        %v343 = vsub.s32 0, %v342
        %v344 = vrot.slane %v339, %v343
        %v362 = vunpack.c.l.b16 %v323
        %v363 = vunpack.c.l.b16 %v324
        %v364 = vunpack.c.l.b16 %v325
        %v365 = vunpack.c.l.b16 %v326
        %v366 = vunpack.c.l.b16 %v327
        %v367 = vunpack.c.l.b16 %v328
        %v368 = vunpack.c.l.b16 %v329
        %v369 = vunpack.c.l.b16 %v330
        %v370 = vunpack.c.l.b16 %v331
        %v371 = vunpack.c.l.b16 %v332
        %v372 = vunpack.c.l.b16 %v333
        %v373 = vunpack.c.l.b16 %v334
        %v374 = vunpack.c.l.b16 %v335
        %v375 = vunpack.c.l.b16 %v336
        %v376 = vunpack.c.l.b16 %v337
        %v377 = vunpack.c.l.b16 %v338
        %v378 = vpack.c.b16 %v363, %v362
        %v379 = vpack.c.b16 %v365, %v364
        %v380 = vpack.c.b16 %v367, %v366
        %v381 = vpack.c.b16 %v369, %v368
        %v382 = vpack.c.b16 %v371, %v370
        %v383 = vpack.c.b16 %v373, %v372
        %v384 = vpack.c.b16 %v375, %v374
        %v385 = vpack.c.b16 %v377, %v376
        %394 = vmatprep.subr.bf16.mxu0 0
        %395 = vmatpush1.bf16.msra.mxu0 %v378
        %396 = vmatprep.subr.bf16.mxu0 0
        %397 = vmatpush1.bf16.msra.mxu0 %v379
        %398 = vmatprep.subr.bf16.mxu0 0
        %399 = vmatpush1.bf16.msra.mxu0 %v380
        %400 = vmatprep.subr.bf16.mxu0 0
        %401 = vmatpush1.bf16.msra.mxu0 %v381
        %402 = vmatprep.subr.bf16.mxu0 0
        %403 = vmatpush1.bf16.msra.mxu0 %v382
        %404 = vmatprep.subr.bf16.mxu0 0
        %405 = vmatpush1.bf16.msra.mxu0 %v383
        %406 = vmatprep.subr.bf16.mxu0 0
        %407 = vmatpush1.bf16.msra.mxu0 %v384
        %408 = vmatprep.subr.bf16.mxu0 0
        %409 = vmatpush1.bf16.msra.mxu0 %v385
        %410 = vmatprep.subr.bf16.mxu0 0
        %411 = vmatpush1.bf16.msra.mxu0 0
        %412 = vmatprep.subr.bf16.mxu0 0
        %413 = vmatpush1.bf16.msra.mxu0 0
        %414 = vmatprep.subr.bf16.mxu0 0
        %415 = vmatpush1.bf16.msra.mxu0 0
        %416 = vmatprep.subr.bf16.mxu0 0
        %417 = vmatpush1.bf16.msra.mxu0 0
        %418 = vmatprep.subr.bf16.mxu0 0
        %419 = vmatpush1.bf16.msra.mxu0 0
        %420 = vmatprep.subr.bf16.mxu0 0
        %421 = vmatpush1.bf16.msra.mxu0 0
        %422 = vmatprep.subr.bf16.mxu0 0
        %423 = vmatpush1.bf16.msra.mxu0 0
        %424 = vmatprep.subr.bf16.mxu0 0
        %425 = vmatpush1.bf16.msra.mxu0 0
        %426 = vmatprep.mubr.bf16.mxu0 0
        %427 = vmatmul.mubr.bf16.gmra.mrb[0].mxu0 %v307
        %v428 = vpop.f32.mrb[0].mxu0
        %v429 = vadd.f32 %v344, %v428
        %v430 = vpop.f32.mrb[0].mxu0
        %v431 = vpop.f32.mrb[0].mxu0
        %v432 = vadd.f32 %v344, %v431
        %v433 = vpop.f32.mrb[0].mxu0
        %434 = vmatprep.mubr.bf16.mxu0 0
        %435 = vmatmul.mubr.bf16.gmra.mrb[0].mxu0 %v308
        %v436 = vpop.f32.mrb[0].mxu0
        %v437 = vadd.f32 %v344, %v436
        %v438 = vpop.f32.mrb[0].mxu0
        %v439 = vpop.f32.mrb[0].mxu0
        %v440 = vadd.f32 %v344, %v439
        %v441 = vpop.f32.mrb[0].mxu0
        %442 = vmatprep.mubr.bf16.mxu0 0
        %443 = vmatmul.mubr.bf16.gmra.mrb[0].mxu0 %v309
        %v444 = vpop.f32.mrb[0].mxu0
        %v445 = vadd.f32 %v344, %v444
        %v446 = vpop.f32.mrb[0].mxu0
        %v447 = vpop.f32.mrb[0].mxu0
        %v448 = vadd.f32 %v344, %v447
        %v449 = vpop.f32.mrb[0].mxu0
        %450 = vmatprep.mubr.bf16.mxu0 0
        %451 = vmatmul.mubr.bf16.gmra.mrb[0].mxu0 %v310
        %v452 = vpop.f32.mrb[0].mxu0
        %v453 = vadd.f32 %v344, %v452
        %v454 = vpop.f32.mrb[0].mxu0
        %v455 = vpop.f32.mrb[0].mxu0
        %v456 = vadd.f32 %v344, %v455
        %v457 = vpop.f32.mrb[0].mxu0
        %458 = vmatprep.mubr.bf16.mxu0 0
        %459 = vmatmul.mubr.bf16.gmra.mrb[0].mxu0 %v311
        %v460 = vpop.f32.mrb[0].mxu0
        %v461 = vadd.f32 %v344, %v460
        %v462 = vpop.f32.mrb[0].mxu0
        %v463 = vpop.f32.mrb[0].mxu0
        %v464 = vadd.f32 %v344, %v463
        %v465 = vpop.f32.mrb[0].mxu0
        %466 = vmatprep.mubr.bf16.mxu0 0
        %467 = vmatmul.mubr.bf16.gmra.mrb[0].mxu0 %v312
        %v468 = vpop.f32.mrb[0].mxu0
        %v469 = vadd.f32 %v344, %v468
        %v470 = vpop.f32.mrb[0].mxu0
        %v471 = vpop.f32.mrb[0].mxu0
        %v472 = vadd.f32 %v344, %v471
        %v473 = vpop.f32.mrb[0].mxu0
        %474 = vmatprep.mubr.bf16.mxu0 0
        %475 = vmatmul.mubr.bf16.gmra.mrb[0].mxu0 %v313
        %v476 = vpop.f32.mrb[0].mxu0
        %v477 = vadd.f32 %v344, %v476
        %v478 = vpop.f32.mrb[0].mxu0
        %v479 = vpop.f32.mrb[0].mxu0
        %v480 = vadd.f32 %v344, %v479
        %v481 = vpop.f32.mrb[0].mxu0
        %482 = vmatprep.mubr.bf16.mxu0 0
        %483 = vmatmul.mubr.bf16.gmra.mrb[0].mxu0 %v314
        %v484 = vpop.f32.mrb[0].mxu0
        %v485 = vadd.f32 %v344, %v484
        %v486 = vpop.f32.mrb[0].mxu0
        %v487 = vpop.f32.mrb[0].mxu0
        %v488 = vadd.f32 %v344, %v487
        %v489 = vpop.f32.mrb[0].mxu0
        %490 = vmatprep.mubr.bf16.mxu0 0
        %491 = vmatmul.mubr.bf16.gmra.mrb[0].mxu0 %v315
        %v492 = vpop.f32.mrb[0].mxu0
        %v493 = vadd.f32 %v344, %v492
        %v494 = vpop.f32.mrb[0].mxu0
        %v495 = vpop.f32.mrb[0].mxu0
        %v496 = vadd.f32 %v344, %v495
        %v497 = vpop.f32.mrb[0].mxu0
        %498 = vmatprep.mubr.bf16.mxu0 0
        %499 = vmatmul.mubr.bf16.gmra.mrb[0].mxu0 %v316
        %v500 = vpop.f32.mrb[0].mxu0
        %v501 = vadd.f32 %v344, %v500
        %v502 = vpop.f32.mrb[0].mxu0
        %v503 = vpop.f32.mrb[0].mxu0
        %v504 = vadd.f32 %v344, %v503
        %v505 = vpop.f32.mrb[0].mxu0
        %506 = vmatprep.mubr.bf16.mxu0 0
        %507 = vmatmul.mubr.bf16.gmra.mrb[0].mxu0 %v317
        %v508 = vpop.f32.mrb[0].mxu0
        %v509 = vadd.f32 %v344, %v508
        %v510 = vpop.f32.mrb[0].mxu0
        %v511 = vpop.f32.mrb[0].mxu0
        %v512 = vadd.f32 %v344, %v511
        %v513 = vpop.f32.mrb[0].mxu0
        %514 = vmatprep.mubr.bf16.mxu0 0
        %515 = vmatmul.mubr.bf16.gmra.mrb[0].mxu0 %v318
        %v516 = vpop.f32.mrb[0].mxu0
        %v517 = vadd.f32 %v344, %v516
        %v518 = vpop.f32.mrb[0].mxu0
        %v519 = vpop.f32.mrb[0].mxu0
        %v520 = vadd.f32 %v344, %v519
        %v521 = vpop.f32.mrb[0].mxu0
        %522 = vmatprep.mubr.bf16.mxu0 0
        %523 = vmatmul.mubr.bf16.gmra.mrb[0].mxu0 %v319
        %v524 = vpop.f32.mrb[0].mxu0
        %v525 = vadd.f32 %v344, %v524
        %v526 = vpop.f32.mrb[0].mxu0
        %v527 = vpop.f32.mrb[0].mxu0
        %v528 = vadd.f32 %v344, %v527
        %v529 = vpop.f32.mrb[0].mxu0
        %530 = vmatprep.mubr.bf16.mxu0 0
        %531 = vmatmul.mubr.bf16.gmra.mrb[0].mxu0 %v320
        %v532 = vpop.f32.mrb[0].mxu0
        %v533 = vadd.f32 %v344, %v532
        %v534 = vpop.f32.mrb[0].mxu0
        %v535 = vpop.f32.mrb[0].mxu0
        %v536 = vadd.f32 %v344, %v535
        %v537 = vpop.f32.mrb[0].mxu0
        %538 = vmatprep.mubr.bf16.mxu0 0
        %539 = vmatmul.mubr.bf16.gmra.mrb[0].mxu0 %v321
        %v540 = vpop.f32.mrb[0].mxu0
        %v541 = vadd.f32 %v344, %v540
        %v542 = vpop.f32.mrb[0].mxu0
        %v543 = vpop.f32.mrb[0].mxu0
        %v544 = vadd.f32 %v344, %v543
        %v545 = vpop.f32.mrb[0].mxu0
        %546 = vmatprep.mubr.bf16.mxu0 0
        %547 = vmatmul.mubr.bf16.gmra.mrb[0].mxu0 %v322
        %v548 = vpop.f32.mrb[0].mxu0
        %v549 = vadd.f32 %v344, %v548
        %v550 = vpop.f32.mrb[0].mxu0
        %v551 = vpop.f32.mrb[0].mxu0
        %v552 = vadd.f32 %v344, %v551
        %v553 = vpop.f32.mrb[0].mxu0
        %554 = vdwg.mxu0
        %v555 = vmul.f32 %v429, 0.5
        %v556 = vmul.f32 %v432, 0.5
        %v557 = vmul.f32 %v437, 0.5
        %v558 = vmul.f32 %v440, 0.5
        %v559 = vmul.f32 %v445, 0.5
        %v560 = vmul.f32 %v448, 0.5
        %v561 = vmul.f32 %v453, 0.5
        %v562 = vmul.f32 %v456, 0.5
        %v563 = vmul.f32 %v461, 0.5
        %v564 = vmul.f32 %v464, 0.5
        %v565 = vmul.f32 %v469, 0.5
        %v566 = vmul.f32 %v472, 0.5
        %v567 = vmul.f32 %v477, 0.5
        %v568 = vmul.f32 %v480, 0.5
        %v569 = vmul.f32 %v485, 0.5
        %v570 = vmul.f32 %v488, 0.5
        %v571 = vmul.f32 %v493, 0.5
        %v572 = vmul.f32 %v496, 0.5
        %v573 = vmul.f32 %v501, 0.5
        %v574 = vmul.f32 %v504, 0.5
        %v575 = vmul.f32 %v509, 0.5
        %v576 = vmul.f32 %v512, 0.5
        %v577 = vmul.f32 %v517, 0.5
        %v578 = vmul.f32 %v520, 0.5
        %v579 = vmul.f32 %v525, 0.5
        %v580 = vmul.f32 %v528, 0.5
        %v581 = vmul.f32 %v533, 0.5
        %v582 = vmul.f32 %v536, 0.5
        %v583 = vmul.f32 %v541, 0.5
        %v584 = vmul.f32 %v544, 0.5
        %v585 = vmul.f32 %v549, 0.5
        %v586 = vmul.f32 %v552, 0.5
        %v587 = vrcp.pop 1.4142135
        %v588 = vmul.f32 %v429, %v587
        %v589 = vmul.f32 %v432, %v587
        %v590 = vmul.f32 %v437, %v587
        %v591 = vmul.f32 %v440, %v587
        %v592 = vmul.f32 %v445, %v587
        %v593 = vmul.f32 %v448, %v587
        %v594 = vmul.f32 %v453, %v587
        %v595 = vmul.f32 %v456, %v587
        %v596 = vmul.f32 %v461, %v587
        %v597 = vmul.f32 %v464, %v587
        %v598 = vmul.f32 %v469, %v587
        %v599 = vmul.f32 %v472, %v587
        %v600 = vmul.f32 %v477, %v587
        %v601 = vmul.f32 %v480, %v587
        %v602 = vmul.f32 %v485, %v587
        %v603 = vmul.f32 %v488, %v587
        %v604 = vmul.f32 %v493, %v587
        %v605 = vmul.f32 %v496, %v587
        %v606 = vmul.f32 %v501, %v587
        %v607 = vmul.f32 %v504, %v587
        %v608 = vmul.f32 %v509, %v587
        %v609 = vmul.f32 %v512, %v587
        %v610 = vmul.f32 %v517, %v587
        %v611 = vmul.f32 %v520, %v587
        %v612 = vmul.f32 %v525, %v587
        %v613 = vmul.f32 %v528, %v587
        %v614 = vmul.f32 %v533, %v587
        %v615 = vmul.f32 %v536, %v587
        %v616 = vmul.f32 %v541, %v587
        %v617 = vmul.f32 %v544, %v587
        %v618 = vmul.f32 %v549, %v587
        %v619 = vmul.f32 %v552, %v587
        %v620 = verf.f32.pop %v588
        %v621 = verf.f32.pop %v589
        %v622 = verf.f32.pop %v590
        %v623 = verf.f32.pop %v591
        %v624 = verf.f32.pop %v592
        %v625 = verf.f32.pop %v593
        %v626 = verf.f32.pop %v594
        %v627 = verf.f32.pop %v595
        %v628 = verf.f32.pop %v596
        %v629 = verf.f32.pop %v597
        %v630 = verf.f32.pop %v598
        %v631 = verf.f32.pop %v599
        %v632 = verf.f32.pop %v600
        %v633 = verf.f32.pop %v601
        %v634 = verf.f32.pop %v602
        %v635 = verf.f32.pop %v603
        %v636 = verf.f32.pop %v604
        %v637 = verf.f32.pop %v605
        %v638 = verf.f32.pop %v606
        %v639 = verf.f32.pop %v607
        %v640 = verf.f32.pop %v608
        %v641 = verf.f32.pop %v609
        %v642 = verf.f32.pop %v610
        %v643 = verf.f32.pop %v611
        %v644 = verf.f32.pop %v612
        %v645 = verf.f32.pop %v613
        %v646 = verf.f32.pop %v614
        %v647 = verf.f32.pop %v615
        %v648 = verf.f32.pop %v616
        %v649 = verf.f32.pop %v617
        %v650 = verf.f32.pop %v618
        %v651 = verf.f32.pop %v619
        %v652 = vadd.f32 %v620, 1.0
        %v653 = vadd.f32 %v621, 1.0
        %v654 = vadd.f32 %v622, 1.0
        %v655 = vadd.f32 %v623, 1.0
        %v656 = vadd.f32 %v624, 1.0
        %v657 = vadd.f32 %v625, 1.0
        %v658 = vadd.f32 %v626, 1.0
        %v659 = vadd.f32 %v627, 1.0
        %v660 = vadd.f32 %v628, 1.0
        %v661 = vadd.f32 %v629, 1.0
        %v662 = vadd.f32 %v630, 1.0
        %v663 = vadd.f32 %v631, 1.0
        %v664 = vadd.f32 %v632, 1.0
        %v665 = vadd.f32 %v633, 1.0
        %v666 = vadd.f32 %v634, 1.0
        %v667 = vadd.f32 %v635, 1.0
        %v668 = vadd.f32 %v636, 1.0
        %v669 = vadd.f32 %v637, 1.0
        %v670 = vadd.f32 %v638, 1.0
        %v671 = vadd.f32 %v639, 1.0
        %v672 = vadd.f32 %v640, 1.0
        %v673 = vadd.f32 %v641, 1.0
        %v674 = vadd.f32 %v642, 1.0
        %v675 = vadd.f32 %v643, 1.0
        %v676 = vadd.f32 %v644, 1.0
        %v677 = vadd.f32 %v645, 1.0
        %v678 = vadd.f32 %v646, 1.0
        %v679 = vadd.f32 %v647, 1.0
        %v680 = vadd.f32 %v648, 1.0
        %v681 = vadd.f32 %v649, 1.0
        %v682 = vadd.f32 %v650, 1.0
        %v683 = vadd.f32 %v651, 1.0
        %v684 = vmul.f32 %v555, %v652
        %v685 = vmul.f32 %v556, %v653
        %v686 = vmul.f32 %v557, %v654
        %v687 = vmul.f32 %v558, %v655
        %v688 = vmul.f32 %v559, %v656
        %v689 = vmul.f32 %v560, %v657
        %v690 = vmul.f32 %v561, %v658
        %v691 = vmul.f32 %v562, %v659
        %v692 = vmul.f32 %v563, %v660
        %v693 = vmul.f32 %v564, %v661
        %v694 = vmul.f32 %v565, %v662
        %v695 = vmul.f32 %v566, %v663
        %v696 = vmul.f32 %v567, %v664
        %v697 = vmul.f32 %v568, %v665
        %v698 = vmul.f32 %v569, %v666
        %v699 = vmul.f32 %v570, %v667
        %v700 = vmul.f32 %v571, %v668
        %v701 = vmul.f32 %v572, %v669
        %v702 = vmul.f32 %v573, %v670
        %v703 = vmul.f32 %v574, %v671
        %v704 = vmul.f32 %v575, %v672
        %v705 = vmul.f32 %v576, %v673
        %v706 = vmul.f32 %v577, %v674
        %v707 = vmul.f32 %v578, %v675
        %v708 = vmul.f32 %v579, %v676
        %v709 = vmul.f32 %v580, %v677
        %v710 = vmul.f32 %v581, %v678
        %v711 = vmul.f32 %v582, %v679
        %v712 = vmul.f32 %v583, %v680
        %v713 = vmul.f32 %v584, %v681
        %v714 = vmul.f32 %v585, %v682
        %v715 = vmul.f32 %v586, %v683
        %v716 = vpack.c.bf16 %v685, %v684
        %v717 = vpack.c.bf16 %v687, %v686
        %v718 = vpack.c.bf16 %v689, %v688
        %v719 = vpack.c.bf16 %v691, %v690
        %v720 = vpack.c.bf16 %v693, %v692
        %v721 = vpack.c.bf16 %v695, %v694
        %v722 = vpack.c.bf16 %v697, %v696
        %v723 = vpack.c.bf16 %v699, %v698
        %v724 = vpack.c.bf16 %v701, %v700
        %v725 = vpack.c.bf16 %v703, %v702
        %v726 = vpack.c.bf16 %v705, %v704
        %v727 = vpack.c.bf16 %v707, %v706
        %v728 = vpack.c.bf16 %v709, %v708
        %v729 = vpack.c.bf16 %v711, %v710
        %v730 = vpack.c.bf16 %v713, %v712
        %v731 = vpack.c.bf16 %v715, %v714
        %v732 = vld [vmem:[#allocation7] sm:$0xf]
        %v733 = vld [vmem:[#allocation7 + $0x4] sm:$0xf]
        %v734 = vld [vmem:[#allocation7 + $0x8] sm:$0xf]
        %v735 = vld [vmem:[#allocation7 + $0xc] sm:$0xf]
        %v736 = vld [vmem:[#allocation7 + $0x10] sm:$0xf]
        %v737 = vld [vmem:[#allocation7 + $0x14] sm:$0xf]
        %v738 = vld [vmem:[#allocation7 + $0x18] sm:$0xf]
        %v739 = vld [vmem:[#allocation7 + $0x1c] sm:$0xf]
        %v740 = vld [vmem:[#allocation7 + $0x20] sm:$0xf]
        %v741 = vld [vmem:[#allocation7 + $0x24] sm:$0xf]
        %v742 = vld [vmem:[#allocation7 + $0x28] sm:$0xf]
        %v743 = vld [vmem:[#allocation7 + $0x2c] sm:$0xf]
        %v744 = vld [vmem:[#allocation7 + $0x30] sm:$0xf]
        %v745 = vld [vmem:[#allocation7 + $0x34] sm:$0xf]
        %v746 = vld [vmem:[#allocation7 + $0x38] sm:$0xf]
        %v747 = vld [vmem:[#allocation7 + $0x3c] sm:$0xf]
        %v748 = vld [vmem:[%s4] sm:$0x1]
        %v750 = vlaneseq
        %v751 = vshrl.u32 %v750, 7
        %v752 = vsub.s32 0, %v751
        %v753 = vrot.slane %v748, %v752
        %v771 = vunpack.c.l.b16 %v732
        %v772 = vunpack.c.l.b16 %v733
        %v773 = vunpack.c.l.b16 %v734
        %v774 = vunpack.c.l.b16 %v735
        %v775 = vunpack.c.l.b16 %v736
        %v776 = vunpack.c.l.b16 %v737
        %v777 = vunpack.c.l.b16 %v738
        %v778 = vunpack.c.l.b16 %v739
        %v779 = vunpack.c.l.b16 %v740
        %v780 = vunpack.c.l.b16 %v741
        %v781 = vunpack.c.l.b16 %v742
        %v782 = vunpack.c.l.b16 %v743
        %v783 = vunpack.c.l.b16 %v744
        %v784 = vunpack.c.l.b16 %v745
        %v785 = vunpack.c.l.b16 %v746
        %v786 = vunpack.c.l.b16 %v747
        %v787 = vpack.c.b16 %v772, %v771
        %v788 = vpack.c.b16 %v774, %v773
        %v789 = vpack.c.b16 %v776, %v775
        %v790 = vpack.c.b16 %v778, %v777
        %v791 = vpack.c.b16 %v780, %v779
        %v792 = vpack.c.b16 %v782, %v781
        %v793 = vpack.c.b16 %v784, %v783
        %v794 = vpack.c.b16 %v786, %v785
        %803 = vmatprep.subr.bf16.mxu0 0
        %804 = vmatpush1.bf16.msra.mxu0 %v787
        %805 = vmatprep.subr.bf16.mxu0 0
        %806 = vmatpush1.bf16.msra.mxu0 %v788
        %807 = vmatprep.subr.bf16.mxu0 0
        %808 = vmatpush1.bf16.msra.mxu0 %v789
        %809 = vmatprep.subr.bf16.mxu0 0
        %810 = vmatpush1.bf16.msra.mxu0 %v790
        %811 = vmatprep.subr.bf16.mxu0 0
        %812 = vmatpush1.bf16.msra.mxu0 %v791
        %813 = vmatprep.subr.bf16.mxu0 0
        %814 = vmatpush1.bf16.msra.mxu0 %v792
        %815 = vmatprep.subr.bf16.mxu0 0
        %816 = vmatpush1.bf16.msra.mxu0 %v793
        %817 = vmatprep.subr.bf16.mxu0 0
        %818 = vmatpush1.bf16.msra.mxu0 %v794
        %819 = vmatprep.subr.bf16.mxu0 0
        %820 = vmatpush1.bf16.msra.mxu0 0
        %821 = vmatprep.subr.bf16.mxu0 0
        %822 = vmatpush1.bf16.msra.mxu0 0
        %823 = vmatprep.subr.bf16.mxu0 0
        %824 = vmatpush1.bf16.msra.mxu0 0
        %825 = vmatprep.subr.bf16.mxu0 0
        %826 = vmatpush1.bf16.msra.mxu0 0
        %827 = vmatprep.subr.bf16.mxu0 0
        %828 = vmatpush1.bf16.msra.mxu0 0
        %829 = vmatprep.subr.bf16.mxu0 0
        %830 = vmatpush1.bf16.msra.mxu0 0
        %831 = vmatprep.subr.bf16.mxu0 0
        %832 = vmatpush1.bf16.msra.mxu0 0
        %833 = vmatprep.subr.bf16.mxu0 0
        %834 = vmatpush1.bf16.msra.mxu0 0
        %835 = vmatprep.mubr.bf16.mxu0 0
        %836 = vmatmul.mubr.bf16.gmra.mrb[0].mxu0 %v716
        %v837 = vpop.f32.mrb[0].mxu0
        %v838 = vadd.f32 %v753, %v837
        %v839 = vpop.f32.mrb[0].mxu0
        %v840 = vpop.f32.mrb[0].mxu0
        %v841 = vadd.f32 %v753, %v840
        %v842 = vpop.f32.mrb[0].mxu0
        %843 = vmatprep.mubr.bf16.mxu0 0
        %844 = vmatmul.mubr.bf16.gmra.mrb[0].mxu0 %v717
        %v845 = vpop.f32.mrb[0].mxu0
        %v846 = vadd.f32 %v753, %v845
        %v847 = vpop.f32.mrb[0].mxu0
        %v848 = vpop.f32.mrb[0].mxu0
        %v849 = vadd.f32 %v753, %v848
        %v850 = vpop.f32.mrb[0].mxu0
        %851 = vmatprep.mubr.bf16.mxu0 0
        %852 = vmatmul.mubr.bf16.gmra.mrb[0].mxu0 %v718
        %v853 = vpop.f32.mrb[0].mxu0
        %v854 = vadd.f32 %v753, %v853
        %v855 = vpop.f32.mrb[0].mxu0
        %v856 = vpop.f32.mrb[0].mxu0
        %v857 = vadd.f32 %v753, %v856
        %v858 = vpop.f32.mrb[0].mxu0
        %859 = vmatprep.mubr.bf16.mxu0 0
        %860 = vmatmul.mubr.bf16.gmra.mrb[0].mxu0 %v719
        %v861 = vpop.f32.mrb[0].mxu0
        %v862 = vadd.f32 %v753, %v861
        %v863 = vpop.f32.mrb[0].mxu0
        %v864 = vpop.f32.mrb[0].mxu0
        %v865 = vadd.f32 %v753, %v864
        %v866 = vpop.f32.mrb[0].mxu0
        %867 = vmatprep.mubr.bf16.mxu0 0
        %868 = vmatmul.mubr.bf16.gmra.mrb[0].mxu0 %v720
        %v869 = vpop.f32.mrb[0].mxu0
        %v870 = vadd.f32 %v753, %v869
        %v871 = vpop.f32.mrb[0].mxu0
        %v872 = vpop.f32.mrb[0].mxu0
        %v873 = vadd.f32 %v753, %v872
        %v874 = vpop.f32.mrb[0].mxu0
        %875 = vmatprep.mubr.bf16.mxu0 0
        %876 = vmatmul.mubr.bf16.gmra.mrb[0].mxu0 %v721
        %v877 = vpop.f32.mrb[0].mxu0
        %v878 = vadd.f32 %v753, %v877
        %v879 = vpop.f32.mrb[0].mxu0
        %v880 = vpop.f32.mrb[0].mxu0
        %v881 = vadd.f32 %v753, %v880
        %v882 = vpop.f32.mrb[0].mxu0
        %883 = vmatprep.mubr.bf16.mxu0 0
        %884 = vmatmul.mubr.bf16.gmra.mrb[0].mxu0 %v722
        %v885 = vpop.f32.mrb[0].mxu0
        %v886 = vadd.f32 %v753, %v885
        %v887 = vpop.f32.mrb[0].mxu0
        %v888 = vpop.f32.mrb[0].mxu0
        %v889 = vadd.f32 %v753, %v888
        %v890 = vpop.f32.mrb[0].mxu0
        %891 = vmatprep.mubr.bf16.mxu0 0
        %892 = vmatmul.mubr.bf16.gmra.mrb[0].mxu0 %v723
        %v893 = vpop.f32.mrb[0].mxu0
        %v894 = vadd.f32 %v753, %v893
        %v895 = vpop.f32.mrb[0].mxu0
        %v896 = vpop.f32.mrb[0].mxu0
        %v897 = vadd.f32 %v753, %v896
        %v898 = vpop.f32.mrb[0].mxu0
        %899 = vmatprep.mubr.bf16.mxu0 0
        %900 = vmatmul.mubr.bf16.gmra.mrb[0].mxu0 %v724
        %v901 = vpop.f32.mrb[0].mxu0
        %v902 = vadd.f32 %v753, %v901
        %v903 = vpop.f32.mrb[0].mxu0
        %v904 = vpop.f32.mrb[0].mxu0
        %v905 = vadd.f32 %v753, %v904
        %v906 = vpop.f32.mrb[0].mxu0
        %907 = vmatprep.mubr.bf16.mxu0 0
        %908 = vmatmul.mubr.bf16.gmra.mrb[0].mxu0 %v725
        %v909 = vpop.f32.mrb[0].mxu0
        %v910 = vadd.f32 %v753, %v909
        %v911 = vpop.f32.mrb[0].mxu0
        %v912 = vpop.f32.mrb[0].mxu0
        %v913 = vadd.f32 %v753, %v912
        %v914 = vpop.f32.mrb[0].mxu0
        %915 = vmatprep.mubr.bf16.mxu0 0
        %916 = vmatmul.mubr.bf16.gmra.mrb[0].mxu0 %v726
        %v917 = vpop.f32.mrb[0].mxu0
        %v918 = vadd.f32 %v753, %v917
        %v919 = vpop.f32.mrb[0].mxu0
        %v920 = vpop.f32.mrb[0].mxu0
        %v921 = vadd.f32 %v753, %v920
        %v922 = vpop.f32.mrb[0].mxu0
        %923 = vmatprep.mubr.bf16.mxu0 0
        %924 = vmatmul.mubr.bf16.gmra.mrb[0].mxu0 %v727
        %v925 = vpop.f32.mrb[0].mxu0
        %v926 = vadd.f32 %v753, %v925
        %v927 = vpop.f32.mrb[0].mxu0
        %v928 = vpop.f32.mrb[0].mxu0
        %v929 = vadd.f32 %v753, %v928
        %v930 = vpop.f32.mrb[0].mxu0
        %931 = vmatprep.mubr.bf16.mxu0 0
        %932 = vmatmul.mubr.bf16.gmra.mrb[0].mxu0 %v728
        %v933 = vpop.f32.mrb[0].mxu0
        %v934 = vadd.f32 %v753, %v933
        %v935 = vpop.f32.mrb[0].mxu0
        %v936 = vpop.f32.mrb[0].mxu0
        %v937 = vadd.f32 %v753, %v936
        %v938 = vpop.f32.mrb[0].mxu0
        %939 = vmatprep.mubr.bf16.mxu0 0
        %940 = vmatmul.mubr.bf16.gmra.mrb[0].mxu0 %v729
        %v941 = vpop.f32.mrb[0].mxu0
        %v942 = vadd.f32 %v753, %v941
        %v943 = vpop.f32.mrb[0].mxu0
        %v944 = vpop.f32.mrb[0].mxu0
        %v945 = vadd.f32 %v753, %v944
        %v946 = vpop.f32.mrb[0].mxu0
        %947 = vmatprep.mubr.bf16.mxu0 0
        %948 = vmatmul.mubr.bf16.gmra.mrb[0].mxu0 %v730
        %v949 = vpop.f32.mrb[0].mxu0
        %v950 = vadd.f32 %v753, %v949
        %v951 = vpop.f32.mrb[0].mxu0
        %v952 = vpop.f32.mrb[0].mxu0
        %v953 = vadd.f32 %v753, %v952
        %v954 = vpop.f32.mrb[0].mxu0
        %955 = vmatprep.mubr.bf16.mxu0 0
        %956 = vmatmul.mubr.bf16.gmra.mrb[0].mxu0 %v731
        %v957 = vpop.f32.mrb[0].mxu0
        %v958 = vadd.f32 %v753, %v957
        %v959 = vpop.f32.mrb[0].mxu0
        %v960 = vpop.f32.mrb[0].mxu0
        %v961 = vadd.f32 %v753, %v960
        %v962 = vpop.f32.mrb[0].mxu0
        %963 = vdwg.mxu0
        %v964 = vmul.f32 %v838, 0.5
        %v965 = vmul.f32 %v841, 0.5
        %v966 = vmul.f32 %v846, 0.5
        %v967 = vmul.f32 %v849, 0.5
        %v968 = vmul.f32 %v854, 0.5
        %v969 = vmul.f32 %v857, 0.5
        %v970 = vmul.f32 %v862, 0.5
        %v971 = vmul.f32 %v865, 0.5
        %v972 = vmul.f32 %v870, 0.5
        %v973 = vmul.f32 %v873, 0.5
        %v974 = vmul.f32 %v878, 0.5
        %v975 = vmul.f32 %v881, 0.5
        %v976 = vmul.f32 %v886, 0.5
        %v977 = vmul.f32 %v889, 0.5
        %v978 = vmul.f32 %v894, 0.5
        %v979 = vmul.f32 %v897, 0.5
        %v980 = vmul.f32 %v902, 0.5
        %v981 = vmul.f32 %v905, 0.5
        %v982 = vmul.f32 %v910, 0.5
        %v983 = vmul.f32 %v913, 0.5
        %v984 = vmul.f32 %v918, 0.5
        %v985 = vmul.f32 %v921, 0.5
        %v986 = vmul.f32 %v926, 0.5
        %v987 = vmul.f32 %v929, 0.5
        %v988 = vmul.f32 %v934, 0.5
        %v989 = vmul.f32 %v937, 0.5
        %v990 = vmul.f32 %v942, 0.5
        %v991 = vmul.f32 %v945, 0.5
        %v992 = vmul.f32 %v950, 0.5
        %v993 = vmul.f32 %v953, 0.5
        %v994 = vmul.f32 %v958, 0.5
        %v995 = vmul.f32 %v961, 0.5
        %v996 = vmul.f32 %v838, %v587
        %v997 = vmul.f32 %v841, %v587
        %v998 = vmul.f32 %v846, %v587
        %v999 = vmul.f32 %v849, %v587
        %v1000 = vmul.f32 %v854, %v587
        %v1001 = vmul.f32 %v857, %v587
        %v1002 = vmul.f32 %v862, %v587
        %v1003 = vmul.f32 %v865, %v587
        %v1004 = vmul.f32 %v870, %v587
        %v1005 = vmul.f32 %v873, %v587
        %v1006 = vmul.f32 %v878, %v587
        %v1007 = vmul.f32 %v881, %v587
        %v1008 = vmul.f32 %v886, %v587
        %v1009 = vmul.f32 %v889, %v587
        %v1010 = vmul.f32 %v894, %v587
        %v1011 = vmul.f32 %v897, %v587
        %v1012 = vmul.f32 %v902, %v587
        %v1013 = vmul.f32 %v905, %v587
        %v1014 = vmul.f32 %v910, %v587
        %v1015 = vmul.f32 %v913, %v587
        %v1016 = vmul.f32 %v918, %v587
        %v1017 = vmul.f32 %v921, %v587
        %v1018 = vmul.f32 %v926, %v587
        %v1019 = vmul.f32 %v929, %v587
        %v1020 = vmul.f32 %v934, %v587
        %v1021 = vmul.f32 %v937, %v587
        %v1022 = vmul.f32 %v942, %v587
        %v1023 = vmul.f32 %v945, %v587
        %v1024 = vmul.f32 %v950, %v587
        %v1025 = vmul.f32 %v953, %v587
        %v1026 = vmul.f32 %v958, %v587
        %v1027 = vmul.f32 %v961, %v587
        %v1028 = verf.f32.pop %v996
        %v1029 = verf.f32.pop %v997
        %v1030 = verf.f32.pop %v998
        %v1031 = verf.f32.pop %v999
        %v1032 = verf.f32.pop %v1000
        %v1033 = verf.f32.pop %v1001
        %v1034 = verf.f32.pop %v1002
        %v1035 = verf.f32.pop %v1003
        %v1036 = verf.f32.pop %v1004
        %v1037 = verf.f32.pop %v1005
        %v1038 = verf.f32.pop %v1006
        %v1039 = verf.f32.pop %v1007
        %v1040 = verf.f32.pop %v1008
        %v1041 = verf.f32.pop %v1009
        %v1042 = verf.f32.pop %v1010
        %v1043 = verf.f32.pop %v1011
        %v1044 = verf.f32.pop %v1012
        %v1045 = verf.f32.pop %v1013
        %v1046 = verf.f32.pop %v1014
        %v1047 = verf.f32.pop %v1015
        %v1048 = verf.f32.pop %v1016
        %v1049 = verf.f32.pop %v1017
        %v1050 = verf.f32.pop %v1018
        %v1051 = verf.f32.pop %v1019
        %v1052 = verf.f32.pop %v1020
        %v1053 = verf.f32.pop %v1021
        %v1054 = verf.f32.pop %v1022
        %v1055 = verf.f32.pop %v1023
        %v1056 = verf.f32.pop %v1024
        %v1057 = verf.f32.pop %v1025
        %v1058 = verf.f32.pop %v1026
        %v1059 = verf.f32.pop %v1027
        %v1060 = vadd.f32 %v1028, 1.0
        %v1061 = vadd.f32 %v1029, 1.0
        %v1062 = vadd.f32 %v1030, 1.0
        %v1063 = vadd.f32 %v1031, 1.0
        %v1064 = vadd.f32 %v1032, 1.0
        %v1065 = vadd.f32 %v1033, 1.0
        %v1066 = vadd.f32 %v1034, 1.0
        %v1067 = vadd.f32 %v1035, 1.0
        %v1068 = vadd.f32 %v1036, 1.0
        %v1069 = vadd.f32 %v1037, 1.0
        %v1070 = vadd.f32 %v1038, 1.0
        %v1071 = vadd.f32 %v1039, 1.0
        %v1072 = vadd.f32 %v1040, 1.0
        %v1073 = vadd.f32 %v1041, 1.0
        %v1074 = vadd.f32 %v1042, 1.0
        %v1075 = vadd.f32 %v1043, 1.0
        %v1076 = vadd.f32 %v1044, 1.0
        %v1077 = vadd.f32 %v1045, 1.0
        %v1078 = vadd.f32 %v1046, 1.0
        %v1079 = vadd.f32 %v1047, 1.0
        %v1080 = vadd.f32 %v1048, 1.0
        %v1081 = vadd.f32 %v1049, 1.0
        %v1082 = vadd.f32 %v1050, 1.0
        %v1083 = vadd.f32 %v1051, 1.0
        %v1084 = vadd.f32 %v1052, 1.0
        %v1085 = vadd.f32 %v1053, 1.0
        %v1086 = vadd.f32 %v1054, 1.0
        %v1087 = vadd.f32 %v1055, 1.0
        %v1088 = vadd.f32 %v1056, 1.0
        %v1089 = vadd.f32 %v1057, 1.0
        %v1090 = vadd.f32 %v1058, 1.0
        %v1091 = vadd.f32 %v1059, 1.0
        %v1092 = vmul.f32 %v964, %v1060
        %v1093 = vmul.f32 %v965, %v1061
        %v1094 = vmul.f32 %v966, %v1062
        %v1095 = vmul.f32 %v967, %v1063
        %v1096 = vmul.f32 %v968, %v1064
        %v1097 = vmul.f32 %v969, %v1065
        %v1098 = vmul.f32 %v970, %v1066
        %v1099 = vmul.f32 %v971, %v1067
        %v1100 = vmul.f32 %v972, %v1068
        %v1101 = vmul.f32 %v973, %v1069
        %v1102 = vmul.f32 %v974, %v1070
        %v1103 = vmul.f32 %v975, %v1071
        %v1104 = vmul.f32 %v976, %v1072
        %v1105 = vmul.f32 %v977, %v1073
        %v1106 = vmul.f32 %v978, %v1074
        %v1107 = vmul.f32 %v979, %v1075
        %v1108 = vmul.f32 %v980, %v1076
        %v1109 = vmul.f32 %v981, %v1077
        %v1110 = vmul.f32 %v982, %v1078
        %v1111 = vmul.f32 %v983, %v1079
        %v1112 = vmul.f32 %v984, %v1080
        %v1113 = vmul.f32 %v985, %v1081
        %v1114 = vmul.f32 %v986, %v1082
        %v1115 = vmul.f32 %v987, %v1083
        %v1116 = vmul.f32 %v988, %v1084
        %v1117 = vmul.f32 %v989, %v1085
        %v1118 = vmul.f32 %v990, %v1086
        %v1119 = vmul.f32 %v991, %v1087
        %v1120 = vmul.f32 %v992, %v1088
        %v1121 = vmul.f32 %v993, %v1089
        %v1122 = vmul.f32 %v994, %v1090
        %v1123 = vmul.f32 %v995, %v1091
        %1124 = vst [vmem:[%s271] sm:$0xff] %v1092
        %1125 = vst [vmem:[%s271 + $0x8] sm:$0xff] %v1093
        %1126 = vst [vmem:[%s271 + $0x10] sm:$0xff] %v1094
        %1127 = vst [vmem:[%s271 + $0x18] sm:$0xff] %v1095
        %1128 = vst [vmem:[%s271 + $0x20] sm:$0xff] %v1096
        %1129 = vst [vmem:[%s271 + $0x28] sm:$0xff] %v1097
        %1130 = vst [vmem:[%s271 + $0x30] sm:$0xff] %v1098
        %1131 = vst [vmem:[%s271 + $0x38] sm:$0xff] %v1099
        %1132 = vst [vmem:[%s271 + $0x40] sm:$0xff] %v1100
        %1133 = vst [vmem:[%s271 + $0x48] sm:$0xff] %v1101
        %1134 = vst [vmem:[%s271 + $0x50] sm:$0xff] %v1102
        %1135 = vst [vmem:[%s271 + $0x58] sm:$0xff] %v1103
        %1136 = vst [vmem:[%s271 + $0x60] sm:$0xff] %v1104
        %1137 = vst [vmem:[%s271 + $0x68] sm:$0xff] %v1105
        %1138 = vst [vmem:[%s271 + $0x70] sm:$0xff] %v1106
        %1139 = vst [vmem:[%s271 + $0x78] sm:$0xff] %v1107
        %1140 = vst [vmem:[%s271 + $0x80] sm:$0xff] %v1108
        %1141 = vst [vmem:[%s271 + $0x88] sm:$0xff] %v1109
        %1142 = vst [vmem:[%s271 + $0x90] sm:$0xff] %v1110
        %1143 = vst [vmem:[%s271 + $0x98] sm:$0xff] %v1111
        %1144 = vst [vmem:[%s271 + $0xa0] sm:$0xff] %v1112
        %1145 = vst [vmem:[%s271 + $0xa8] sm:$0xff] %v1113
        %1146 = vst [vmem:[%s271 + $0xb0] sm:$0xff] %v1114
        %1147 = vst [vmem:[%s271 + $0xb8] sm:$0xff] %v1115
        %1148 = vst [vmem:[%s271 + $0xc0] sm:$0xff] %v1116
        %1149 = vst [vmem:[%s271 + $0xc8] sm:$0xff] %v1117
        %1150 = vst [vmem:[%s271 + $0xd0] sm:$0xff] %v1118
        %1151 = vst [vmem:[%s271 + $0xd8] sm:$0xff] %v1119
        %1152 = vst [vmem:[%s271 + $0xe0] sm:$0xff] %v1120
        %1153 = vst [vmem:[%s271 + $0xe8] sm:$0xff] %v1121
        %1154 = vst [vmem:[%s271 + $0xf0] sm:$0xff] %v1122
        %1155 = vst [vmem:[%s271 + $0xf8] sm:$0xff] %v1123
        %s1156 = sand.u32 %s141, 1
        %s1157 = scalar_lea.sflag [#allocation4], %s1156
        %s1158 = sand.u32 %s141, 1
        %s1159 = smul.addr %s1158, 256
        %s1160 = scalar_lea.vmem [#allocation8], %s1159
        // Predicated region
        $region53: #{tpu_custom_call.1} parent=39 // pred_check
          %p1161 = pneg %p151
        $region54: #{tpu_custom_call.1} parent=39 // pred_check_branch
          %1163 = sbr.rel (%p1161) target = $region56
        $region55: #{tpu_custom_call.1} parent=39 // pred_region
          %s1164 = smul.u32 32, %s23
          %s1166 = ssub.s32 4096, 4096
          %1167 = vsyncadd %s1157, %s1166
          %s1168 = smul.addr %s1164, 128
          %s1169 = scalar_lea.hbm %s5, %s1168
          %s1170 = sshll.u32 %s1160, 4
          %s1171 = int_to_ptr.vmem [resolvable:$true] %s1170
          %1176 = dma.vmem_to_hbm [thread:$0]  %s1171, 4096, %s1169, %s1157, 128, 128, 8
        $region56: #{tpu_custom_call.1} parent=39 // pred_fallthru
          _
      $region40: #{tpu_custom_call.1} parent=5 // pred_fallthru
        _
      %p1177 = scmp.le.s32.totalorder 2, %s18
      // Predicated region
      $region57: #{tpu_custom_call.1} parent=5 // pred_check
        %p1178 = pneg %p1177
      $region58: #{tpu_custom_call.1} parent=5 // pred_check_branch
        %1180 = sbr.rel (%p1178) target = $region60
      $region59: #{tpu_custom_call.1} parent=5 // pred_region
        %s1181 = ssub.s32 %s18, 2
        // Predicated region
        $region61: #{tpu_custom_call.1} parent=59 // pred_check
          %p1182 = pneg %p157
        $region62: #{tpu_custom_call.1} parent=59 // pred_check_branch
          %1184 = sbr.rel (%p1182) target = $region64
        $region63: #{tpu_custom_call.1} parent=59 // pred_region
          %s1185 = sand.u32 %s142, 1
          %s1186 = scalar_lea.sflag [#allocation4], %s1185
          %s1187 = sand.u32 %s142, 1
          %s1188 = smul.addr %s1187, 256
          %s1189 = scalar_lea.vmem [#allocation8], %s1188
          %1190 = dma.done %s1186, 4096
        $region64: #{tpu_custom_call.1} parent=59 // pred_fallthru
          _
      $region60: #{tpu_custom_call.1} parent=5 // pred_fallthru
        _
    $region6: #{tpu_custom_call.1} parent=1 // loop_footer
      %s22 = sadd.s32 1, %s18
    $region7: #{tpu_custom_call.1} parent=1 // loop_footer_branch
      %17 = sbr.rel target = $region3
    $region8: #{tpu_custom_call.1} parent=1 // loop_exit
      _
    %1191 = vsyncpa [#allocation3], 1
    %s1192 = scalar_lea.sflag [#allocation3], 1
    %1193 = vsyncpa %s1192, 1
    %1194 = vsyncpa [#allocation6], 1
    %1195 = vsyncpa [#allocation4], 1
    %s1196 = scalar_lea.sflag [#allocation4], 1
    %1197 = vsyncpa %s1196, 1

</llo_original>
